<compile_context>
chip_gen: v6e
topology: v6e:2x2x1
jax: 0.10.0
libtpu: 0.0.40
codegen_flags: <defaults>
</compile_context>

<pallas_src>
import jax
import jax.numpy as jnp
from jax import lax
from jax.experimental import pallas as pl
from jax.experimental.pallas import tpu as pltpu


def cnn_block_kernel(x_ref, w_ref, b_ref, o_ref):
    """One batch block per grid step.

    x_ref: (B_BLK, L, Cin)        bf16 input slab (full sequence per row)
    w_ref: (K, Cin, Cout_pad)     bf16 conv weights, tap-major, Cout zero-padded to 128
    b_ref: (1, Cout_pad)          f32 conv bias (zero-padded)
    o_ref: (B_BLK, Cout_pad)      f32 mean-pooled ReLU(conv) output slab (lane-dense)
    """
    b_blk, L, c_in = x_ref.shape
    K, _, c_out_pad = w_ref.shape
    l_out = L - K + 1
    inv_l_out = 1.0 / float(l_out)              # compile-time constant

    x = x_ref[...]                               # (B_BLK, L, Cin) bf16
    acc = jnp.zeros((b_blk, l_out, c_out_pad), jnp.float32)
    # K is static -> unrolled: accumulate K shifted matmuls, each contracting Cin only.
    for k in range(K):
        acc = acc + lax.dot_general(
            x[:, k:k + l_out, :],                # (B_BLK, l_out, Cin)
            w_ref[k],                            # (Cin, Cout_pad), static index
            dimension_numbers=(((2,), (0,)), ((), ())),
            preferred_element_type=jnp.float32)  # (B_BLK, l_out, Cout_pad) f32

    # Epilogue in f32: bias, ReLU, mean over the full conv output length.
    acc = jnp.maximum(acc + b_ref[0, :][None, None, :], 0.0)
    o_ref[...] = (jnp.sum(acc, axis=1) * inv_l_out).astype(o_ref.dtype)


def _num_tensorcores():
    """2 TensorCores per chip on v7x (and v4/v5p megacore); 1 on v5e/v6e."""
    try:
        kind = jax.devices()[0].device_kind.lower()
    except Exception:
        return 1
    if ("v7" in kind) or ("7x" in kind) or ("v4" in kind) or ("v5p" in kind):
        return 2
    return 1


def _fits_vmem(b_blk, L, c_in, K, c_out_pad, budget_bytes=24 * 1024 * 1024):
    """Conservative per-step VMEM estimate: double-buffered operands + f32 temps."""
    l_out = L - K + 1
    in_bytes = b_blk * L * c_in * 2 * 2              # bf16 input slab, double-buffered
    w_bytes = K * c_in * c_out_pad * 2 * 2           # bf16 weights, double-buffered
    bias_bytes = c_out_pad * 4 * 2
    out_bytes = b_blk * c_out_pad * 4 * 2            # f32 output slab, double-buffered
    acc_bytes = b_blk * l_out * c_out_pad * 4 * 2    # f32 accumulator + relu temp
    return in_bytes + w_bytes + bias_bytes + out_bytes + acc_bytes <= budget_bytes


def _pick_batch_block(B, L, c_in, K, c_out_pad, n_cores):
    """Largest divisor of B that fits the VMEM budget; on multi-TC chips require at
    least n_cores grid steps so both TensorCores get work."""
    best = 1
    for d in sorted((d for d in range(1, B + 1) if B % d == 0), reverse=True):
        if B // d < n_cores:
            continue
        if not _fits_vmem(d, L, c_in, K, c_out_pad):
            continue
        best = d
        break
    return best


def cnn_block_forward(x_ncl, weight_ock, bias_o):
    """x_ncl: (B, Cin, L) f32 (PyTorch Conv1d layout)
    weight_ock: (Cout, Cin, K) f32 (PyTorch Conv1d weight layout)
    bias_o: (Cout,) f32
    returns: (B, Cout, 1) f32, matching CnnBlock.forward.
    """
    B, c_in, L = x_ncl.shape
    c_out, w_cin, K = weight_ock.shape
    assert w_cin == c_in and L >= K

    # Pad the output-channel (lane) dim to a full 128-lane tile -> unmasked stores and
    # a full MXU N tile.  Padded channels carry zero weight & bias -> exact zeros.
    c_out_pad = max(128, ((c_out + 127) // 128) * 128)

    n_cores = _num_tensorcores()
    b_blk = _pick_batch_block(B, L, c_in, K, c_out_pad, n_cores)

    # NCL -> BLC and bf16 cast fused into one XLA pass over the (small) input.
    x_blc = jnp.transpose(x_ncl, (0, 2, 1)).astype(jnp.bfloat16)           # (B, L, Cin)
    # Tap-major weights: w_kio[k, c, o] = weight[o, c, k], zero-padded on o.
    w_kio = jnp.transpose(weight_ock, (2, 1, 0)).astype(jnp.bfloat16)      # (K, Cin, Cout)
    w_pad = jnp.zeros((K, c_in, c_out_pad), jnp.bfloat16).at[:, :, :c_out].set(w_kio)
    b_pad = jnp.zeros((1, c_out_pad), jnp.float32).at[0, :c_out].set(
        bias_o.astype(jnp.float32))

    out = pl.pallas_call(
        cnn_block_kernel,
        out_shape=jax.ShapeDtypeStruct((B, c_out_pad), jnp.float32),
        grid_spec=pltpu.PrefetchScalarGridSpec(
            num_scalar_prefetch=0,
            grid=(B // b_blk,),
            in_specs=[
                pl.BlockSpec((b_blk, L, c_in), lambda b: (b, 0, 0)),
                pl.BlockSpec((K, c_in, c_out_pad), lambda b: (0, 0, 0)),
                pl.BlockSpec((1, c_out_pad), lambda b: (0, 0)),
            ],
            out_specs=pl.BlockSpec((b_blk, c_out_pad), lambda b: (b, 0)),
        ),
        compiler_params=pltpu.CompilerParams(
            dimension_semantics=("parallel",)),
    )(x_blc, w_pad, b_pad)

    return out[:, :c_out].reshape(B, c_out, 1)


def _reference_forward(x_ncl, weight_ock, bias_o):
    """Plain-JAX reference (conv1d 'valid' + relu + avg pool over full conv length)."""
    B, c_in, L = x_ncl.shape
    c_out, _, K = weight_ock.shape
    l_out = L - K + 1
    windows = jnp.stack([x_ncl[:, :, k:k + l_out] for k in range(K)], axis=-1)  # (B,Cin,l_out,K)
    conv = jnp.einsum('bctk,ock->bot', windows, weight_ock) + bias_o[None, :, None]
    conv = jnp.maximum(conv, 0.0)
    return jnp.mean(conv, axis=-1, keepdims=True)  # (B, Cout, 1)


if __name__ == "__main__":
    # Module hyperparameters (small, consistent with CnnBlock.__init__)
    input_size = 32      # Conv1d in_channels == embedding dim
    kernel_size = 3
    num_channels = 16    # Conv1d out_channels
    max_post_len = 16    # sequence length; AvgPool1d kernel = max_post_len - kernel_size + 1
    batch = 2

    key = jax.random.PRNGKey(0)
    kx, kw, kb = jax.random.split(key, 3)

    fan_in = input_size * kernel_size
    bound = 1.0 / (fan_in ** 0.5)
    weight = jax.random.uniform(kw, (num_channels, input_size, kernel_size),
                                jnp.float32, -bound, bound)
    bias = jax.random.uniform(kb, (num_channels,), jnp.float32, -bound, bound)

    # Input in PyTorch Conv1d layout: (B, in_channels, max_post_len)
    x = jax.random.normal(kx, (batch, input_size, max_post_len), jnp.float32)

    out = cnn_block_forward(x, weight, bias)
    out = jax.block_until_ready(out)

    # Reference with the same bf16-rounded operands (kernel feeds bf16 to the MXU,
    # accumulates in f32), so tolerances can stay tight.
    x_bf = x.astype(jnp.bfloat16).astype(jnp.float32)
    w_bf = weight.astype(jnp.bfloat16).astype(jnp.float32)
    ref = _reference_forward(x_bf, w_bf, bias)

    assert out.shape == (batch, num_channels, 1)
    assert jnp.allclose(out, ref, atol=1e-4, rtol=1e-4)

    print("KERNEL_OK")
</pallas_src>

<mosaic_0001>
module attributes {stable_mosaic.version = 11 : i64} {
  func.func @cnn_block_kernel(%arg0: i32, %arg1: memref<2x16x32xbf16, #tpu.memory_space<vmem>>, %arg2: memref<3x32x128xbf16, #tpu.memory_space<vmem>>, %arg3: memref<1x128xf32, #tpu.memory_space<vmem>>, %arg4: memref<2x128xf32, #tpu.memory_space<vmem>>) attributes {dimension_semantics = [#tpu.dimension_semantics<parallel>], iteration_bounds = array<i64: 1>, scalar_prefetch = 0 : i64, scratch_operands = 0 : i64, tpu.core_type = #tpu.core_type<tc>, window_params = [{transform_indices = @transform_0, window_bounds = array<i64: 2, 16, 32>}, {pipeline_mode = #tpu.pipeline_mode<synchronous>, transform_indices = @transform_1, window_bounds = array<i64: 3, 32, 128>}, {pipeline_mode = #tpu.pipeline_mode<synchronous>, transform_indices = @transform_2, window_bounds = array<i64: 1, 128>}, {transform_indices = @transform_3, window_bounds = array<i64: 2, 128>}]} {
    %c0 = arith.constant 0 : index
    %c0_0 = arith.constant 0 : index
    %c0_1 = arith.constant 0 : index
    %0 = vector.load %arg1[%c0, %c0_0, %c0_1] : memref<2x16x32xbf16, #tpu.memory_space<vmem>>, vector<2x16x32xbf16>
    %cst = arith.constant 0.000000e+00 : f32
    %1 = vector.broadcast %cst : f32 to vector<2x14x128xf32>
    %2 = vector.extract_strided_slice %0 {offsets = [0, 0, 0], sizes = [2, 14, 32], strides = [1, 1, 1]} : vector<2x16x32xbf16> to vector<2x14x32xbf16>
    %c0_2 = arith.constant 0 : index
    %c0_3 = arith.constant 0 : index
    %c0_4 = arith.constant 0 : index
    %3 = vector.load %arg2[%c0_2, %c0_3, %c0_4] : memref<3x32x128xbf16, #tpu.memory_space<vmem>>, vector<1x32x128xbf16>
    %4 = vector.shape_cast %3 : vector<1x32x128xbf16> to vector<32x128xbf16>
    %cst_5 = arith.constant dense<0.000000e+00> : vector<2x14x128xf32>
    %5 = tpu.matmul %2, %4, %cst_5 {dimension_numbers = #tpu.dot_dimension_numbers<[2], [0], [0, 1], [1], [0, 0, 0, 1, 1, 1], [], []>} : vector<2x14x32xbf16>, vector<32x128xbf16>, vector<2x14x128xf32> -> vector<2x14x128xf32>
    %6 = arith.addf %1, %5 : vector<2x14x128xf32>
    %7 = vector.extract_strided_slice %0 {offsets = [0, 1, 0], sizes = [2, 14, 32], strides = [1, 1, 1]} : vector<2x16x32xbf16> to vector<2x14x32xbf16>
    %c1 = arith.constant 1 : index
    %c0_6 = arith.constant 0 : index
    %c0_7 = arith.constant 0 : index
    %8 = vector.load %arg2[%c1, %c0_6, %c0_7] : memref<3x32x128xbf16, #tpu.memory_space<vmem>>, vector<1x32x128xbf16>
    %9 = vector.shape_cast %8 : vector<1x32x128xbf16> to vector<32x128xbf16>
    %cst_8 = arith.constant dense<0.000000e+00> : vector<2x14x128xf32>
    %10 = tpu.matmul %7, %9, %cst_8 {dimension_numbers = #tpu.dot_dimension_numbers<[2], [0], [0, 1], [1], [0, 0, 0, 1, 1, 1], [], []>} : vector<2x14x32xbf16>, vector<32x128xbf16>, vector<2x14x128xf32> -> vector<2x14x128xf32>
    %11 = arith.addf %6, %10 : vector<2x14x128xf32>
    %12 = vector.extract_strided_slice %0 {offsets = [0, 2, 0], sizes = [2, 14, 32], strides = [1, 1, 1]} : vector<2x16x32xbf16> to vector<2x14x32xbf16>
    %c2 = arith.constant 2 : index
    %c0_9 = arith.constant 0 : index
    %c0_10 = arith.constant 0 : index
    %13 = vector.load %arg2[%c2, %c0_9, %c0_10] : memref<3x32x128xbf16, #tpu.memory_space<vmem>>, vector<1x32x128xbf16>
    %14 = vector.shape_cast %13 : vector<1x32x128xbf16> to vector<32x128xbf16>
    %cst_11 = arith.constant dense<0.000000e+00> : vector<2x14x128xf32>
    %15 = tpu.matmul %12, %14, %cst_11 {dimension_numbers = #tpu.dot_dimension_numbers<[2], [0], [0, 1], [1], [0, 0, 0, 1, 1, 1], [], []>} : vector<2x14x32xbf16>, vector<32x128xbf16>, vector<2x14x128xf32> -> vector<2x14x128xf32>
    %16 = arith.addf %11, %15 : vector<2x14x128xf32>
    %c0_12 = arith.constant 0 : index
    %c0_13 = arith.constant 0 : index
    %17 = vector.load %arg3[%c0_12, %c0_13] : memref<1x128xf32, #tpu.memory_space<vmem>>, vector<1x128xf32>
    %18 = vector.shape_cast %17 : vector<1x128xf32> to vector<128xf32>
    %19 = vector.shape_cast %18 : vector<128xf32> to vector<1x1x128xf32>
    %20 = vector.broadcast %19 : vector<1x1x128xf32> to vector<2x14x128xf32>
    %21 = arith.addf %16, %20 : vector<2x14x128xf32>
    %cst_14 = arith.constant 0.000000e+00 : f32
    %22 = vector.broadcast %cst_14 : f32 to vector<2x14x128xf32>
    %23 = arith.maximumf %21, %22 : vector<2x14x128xf32>
    %cst_15 = arith.constant dense<0.000000e+00> : vector<2x128xf32>
    %24 = vector.multi_reduction <add>, %23, %cst_15 [1] : vector<2x14x128xf32> to vector<2x128xf32>
    %cst_16 = arith.constant 0.0714285746 : f32
    %25 = vector.broadcast %cst_16 : f32 to vector<2x128xf32>
    %26 = arith.mulf %24, %25 : vector<2x128xf32>
    %c0_17 = arith.constant 0 : index
    %c0_18 = arith.constant 0 : index
    %27 = vector.load %arg4[%c0_17, %c0_18] : memref<2x128xf32, #tpu.memory_space<vmem>>, vector<2x128xf32>
    tpu.vector_store %arg4[%c0_17, %c0_18], %26 {strides = array<i32>} : memref<2x128xf32, #tpu.memory_space<vmem>>, vector<2x128xf32>,
    return
  }
  func.func @transform_0(%arg0: i32) -> (i32, i32, i32) {
    %c0_i32 = arith.constant 0 : i32
    %c0_i32_0 = arith.constant 0 : i32
    %c0_i32_1 = arith.constant 0 : i32
    return %arg0, %c0_i32, %c0_i32_0 : i32, i32, i32
  }
  func.func @transform_1(%arg0: i32) -> (i32, i32, i32) {
    %c0_i32 = arith.constant 0 : i32
    %c0_i32_0 = arith.constant 0 : i32
    %c0_i32_1 = arith.constant 0 : i32
    %c0_i32_2 = arith.constant 0 : i32
    return %c0_i32, %c0_i32_0, %c0_i32_1 : i32, i32, i32
  }
  func.func @transform_2(%arg0: i32) -> (i32, i32) {
    %c0_i32 = arith.constant 0 : i32
    %c0_i32_0 = arith.constant 0 : i32
    %c0_i32_1 = arith.constant 0 : i32
    return %c0_i32, %c0_i32_0 : i32, i32
  }
  func.func @transform_3(%arg0: i32) -> (i32, i32) {
    %c0_i32 = arith.constant 0 : i32
    %c0_i32_0 = arith.constant 0 : i32
    return %arg0, %c0_i32 : i32, i32
  }
}

</mosaic_0001>

<llo_original>
// kernel: tpu_custom_call.1
$region0: #{tpu_custom_call.1}
  #allocation0 [shape = 'u32[]', space=smem, size = 0x4, offset = 0x4, fixed_abs, tag = 'smem constant byte address 0x4 - core index']
  #allocation1 [shape = 'u32[144,128]{1,0:T(1,128)}', space=vmem, size = 0x12000, scoped, tag = 'internal scratch']
  %s0 = inlined_call_operand.hbm [shape: bf16[2,16,32], index: 0, kind: input, shape index: {}]
  %s1 = inlined_call_operand.hbm [shape: bf16[3,32,128], index: 1, kind: input, shape index: {}]
  %s2 = inlined_call_operand.vmem [shape: f32[1,128], index: 2, kind: input, shape index: {}]
  %s3 = inlined_call_operand.hbm [shape: f32[2,128], index: 3, kind: output, shape index: {}]
  %s4 = sld [smem:[#allocation0]]
  $region30: #{tpu_custom_call.1} parent=0
    _
  %s6 = ssub.s32 1, %s4
  %s7 = scalar_select 0, %s6, %s4
  $region1: #{tpu_custom_call.1} parent=0
    #allocation2 [shape = 'u8[8192]{0}', space=vmem, size = 0x2000, scoped, tag = 'input window, operand 0, single buffered']
    #allocation3 [shape = 's32[1]{0}', space=sflag, size = 0x4, scoped, tag = 'scoped memory for tpu_custom_call.1']
    #allocation4 [shape = 's32[1]{0}', space=sflag, size = 0x4, scoped, tag = 'scoped memory for tpu_custom_call.1']
    #allocation5 [shape = 'u8[24576]{0}', space=vmem, size = 0x6000, scoped, tag = 'input window, operand 1, single buffered']
    #allocation6 [shape = 's32[1]{0}', space=sflag, size = 0x4, scoped, tag = 'scoped memory for tpu_custom_call.1']
    #allocation7 [shape = 'u8[1024]{0}', space=vmem, size = 0x400, scoped, tag = 'output window, operand 0, single buffered']
    %8 = vsyncpa [#allocation3], 0
    %9 = vsyncpa [#allocation6], 0
    %10 = vsyncpa [#allocation4], 0
    // Predicated region
    $region2: #{tpu_custom_call.1} parent=1 // pred_check
      _
    $region3: #{tpu_custom_call.1} parent=1 // pred_check_branch
      %12 = sbr.rel (0) target = $region5
    $region4: #{tpu_custom_call.1} parent=1 // pred_region
      %s14 = ssub.s32 256, 256
      %15 = vsyncadd [#allocation3], %s14
      %s16 = sshll.u32 [#allocation2], 4
      %s17 = int_to_ptr.vmem [resolvable:$true] %s16
      %22 = dma.hbm_to_vmem [thread:$0]  %s0, 256, %s17, [#allocation3], 64, 64, 4
    $region5: #{tpu_custom_call.1} parent=1 // pred_fallthru
      _
    // Predicated region
    $region6: #{tpu_custom_call.1} parent=1 // pred_check
      _
    $region7: #{tpu_custom_call.1} parent=1 // pred_check_branch
      %24 = sbr.rel (0) target = $region9
    $region8: #{tpu_custom_call.1} parent=1 // pred_region
      %s26 = ssub.s32 768, 768
      %27 = vsyncadd [#allocation6], %s26
      %s28 = sshll.u32 [#allocation5], 4
      %s29 = int_to_ptr.vmem [resolvable:$true] %s28
      %34 = dma.hbm_to_vmem [thread:$0]  %s1, 768, %s29, [#allocation6], 64, 64, 4
    $region9: #{tpu_custom_call.1} parent=1 // pred_fallthru
      _
    // Predicated region
    $region10: #{tpu_custom_call.1} parent=1 // pred_check
      _
    $region11: #{tpu_custom_call.1} parent=1 // pred_check_branch
      %36 = sbr.rel (0) target = $region13
    $region12: #{tpu_custom_call.1} parent=1 // pred_region
      _
    $region13: #{tpu_custom_call.1} parent=1 // pred_fallthru
      _
    // Predicated region
    $region14: #{tpu_custom_call.1} parent=1 // pred_check
      _
    $region15: #{tpu_custom_call.1} parent=1 // pred_check_branch
      %38 = sbr.rel (0) target = $region17
    $region16: #{tpu_custom_call.1} parent=1 // pred_region
      %39 = dma.done [#allocation3], 256
    $region17: #{tpu_custom_call.1} parent=1 // pred_fallthru
      _
    // Predicated region
    $region18: #{tpu_custom_call.1} parent=1 // pred_check
      _
    $region19: #{tpu_custom_call.1} parent=1 // pred_check_branch
      %41 = sbr.rel (0) target = $region21
    $region20: #{tpu_custom_call.1} parent=1 // pred_region
      %42 = dma.done [#allocation6], 768
    $region21: #{tpu_custom_call.1} parent=1 // pred_fallthru
      _
    %v44 = vld [vmem:[#allocation2] sm:$0xf]
    %v45 = vld [vmem:[#allocation2 + $0x4] sm:$0xf]
    %v46 = vld [vmem:[#allocation2 + $0x8] sm:$0xf]
    %v47 = vld [vmem:[#allocation2 + $0xc] sm:$0xf]
    %v48 = vld [vmem:[#allocation5] sm:$0xf]
    %v49 = vld [vmem:[#allocation5 + $0x4] sm:$0xf]
    %v50 = vld [vmem:[#allocation5 + $0x8] sm:$0xf]
    %v51 = vld [vmem:[#allocation5 + $0xc] sm:$0xf]
    %s52 = scalar_lea.vmem [#allocation5], 16
    %v53 = vld [vmem:[%s52] sm:$0xf]
    %v54 = vld [vmem:[%s52 + $0x4] sm:$0xf]
    %v55 = vld [vmem:[%s52 + $0x8] sm:$0xf]
    %v56 = vld [vmem:[%s52 + $0xc] sm:$0xf]
    %v62 = vunpack.c.l.s4 1966171168
    %v63 = vunpack.c.0.s8 %v62
    %v64 = vlaneseq
    %v65 = vshrl.u32 %v64, 7
    %v66 = vsub.s32 %v63, %v65
    %v67 = vrot.slane %v44, %v66
    %v68 = vcombine.high %v67, %v67
    %v70 = vunpack.c.l.s4 1966171168
    %v71 = vunpack.c.0.s8 %v70
    %v72 = vlaneseq
    %v73 = vshrl.u32 %v72, 7
    %v74 = vsub.s32 %v71, %v73
    %v75 = vrot.slane %v67, %v74
    %v77 = vunpack.c.l.s4 1966171168
    %v78 = vunpack.c.0.s8 %v77
    %v79 = vlaneseq
    %v80 = vshrl.u32 %v79, 7
    %v81 = vsub.s32 %v78, %v80
    %v82 = vrot.slane %v68, %v81
    %v83 = vcombine.high %v75, %v75
    %v84 = vcombine.high %v82, %v82
    %v86 = vunpack.c.l.s4 1966171168
    %v87 = vunpack.c.0.s8 %v86
    %v88 = vlaneseq
    %v89 = vshrl.u32 %v88, 7
    %v90 = vsub.s32 %v87, %v89
    %v91 = vrot.slane %v45, %v90
    %v92 = vcombine.high %v91, %v91
    %v94 = vunpack.c.l.s4 1966171168
    %v95 = vunpack.c.0.s8 %v94
    %v96 = vlaneseq
    %v97 = vshrl.u32 %v96, 7
    %v98 = vsub.s32 %v95, %v97
    %v99 = vrot.slane %v91, %v98
    %v101 = vunpack.c.l.s4 1966171168
    %v102 = vunpack.c.0.s8 %v101
    %v103 = vlaneseq
    %v104 = vshrl.u32 %v103, 7
    %v105 = vsub.s32 %v102, %v104
    %v106 = vrot.slane %v92, %v105
    %v107 = vcombine.high %v99, %v99
    %v108 = vcombine.high %v106, %v106
    %v110 = vunpack.c.l.s4 1966171168
    %v111 = vunpack.c.0.s8 %v110
    %v112 = vlaneseq
    %v113 = vshrl.u32 %v112, 7
    %v114 = vsub.s32 %v111, %v113
    %v115 = vrot.slane %v46, %v114
    %v116 = vcombine.high %v115, %v115
    %v118 = vunpack.c.l.s4 1966171168
    %v119 = vunpack.c.0.s8 %v118
    %v120 = vlaneseq
    %v121 = vshrl.u32 %v120, 7
    %v122 = vsub.s32 %v119, %v121
    %v123 = vrot.slane %v115, %v122
    %v125 = vunpack.c.l.s4 1966171168
    %v126 = vunpack.c.0.s8 %v125
    %v127 = vlaneseq
    %v128 = vshrl.u32 %v127, 7
    %v129 = vsub.s32 %v126, %v128
    %v130 = vrot.slane %v116, %v129
    %v131 = vcombine.high %v123, %v123
    %v132 = vcombine.high %v130, %v130
    %v134 = vunpack.c.l.s4 1966171168
    %v135 = vunpack.c.0.s8 %v134
    %v136 = vlaneseq
    %v137 = vshrl.u32 %v136, 7
    %v138 = vsub.s32 %v135, %v137
    %v139 = vrot.slane %v47, %v138
    %v140 = vcombine.high %v139, %v139
    %v142 = vunpack.c.l.s4 1966171168
    %v143 = vunpack.c.0.s8 %v142
    %v144 = vlaneseq
    %v145 = vshrl.u32 %v144, 7
    %v146 = vsub.s32 %v143, %v145
    %v147 = vrot.slane %v139, %v146
    %v149 = vunpack.c.l.s4 1966171168
    %v150 = vunpack.c.0.s8 %v149
    %v151 = vlaneseq
    %v152 = vshrl.u32 %v151, 7
    %v153 = vsub.s32 %v150, %v152
    %v154 = vrot.slane %v140, %v153
    %v155 = vcombine.high %v147, %v147
    %v156 = vcombine.high %v154, %v154
    %vm157 = vsmask.f32 256
    %vm158 = vsmask.f32 1284
    %vm159 = vmor %vm157, %vm158
    %vm160 = vsmask.f32 2312
    %vm161 = vmor %vm159, %vm160
    %vm162 = vsmask.f32 3340
    %vm163 = vmor %vm161, %vm162
    %vm164 = vsmask.f32 4368
    %vm165 = vmor %vm163, %vm164
    %vm166 = vsmask.f32 5396
    %vm167 = vmor %vm165, %vm166
    %vm168 = vsmask.f32 6424
    %vm169 = vmor %vm167, %vm168
    %vm170 = vsmask.f32 7452
    %vm171 = vmor %vm169, %vm170
    %v173 = vshrl.u32 %v75, 16
    %v175 = vrot.slane %v173, 7
    %v176 = vrot.slane %v175, 1
    %v178 = vshll.u32 %v82, 16
    %v180 = vsel %vm171, %v176, %v178
    %v181 = vshrl.u32 %v82, 16
    %v183 = vrot.slane %v181, 7
    %v184 = vrot.slane %v183, 1
    %v186 = vshll.u32 %v83, 16
    %v188 = vsel %vm171, %v184, %v186
    %v189 = vshrl.u32 %v83, 16
    %v191 = vrot.slane %v189, 7
    %v192 = vrot.slane %v191, 1
    %v194 = vshll.u32 %v84, 16
    %v196 = vsel %vm171, %v192, %v194
    %v197 = vshrl.u32 %v84, 16
    %v199 = vrot.slane %v197, 7
    %v200 = vrot.slane %v199, 1
    %v202 = vshll.u32 %v99, 16
    %v204 = vsel %vm171, %v200, %v202
    %v205 = vshrl.u32 %v99, 16
    %v207 = vrot.slane %v205, 7
    %v208 = vrot.slane %v207, 1
    %v210 = vshll.u32 %v106, 16
    %v212 = vsel %vm171, %v208, %v210
    %v213 = vshrl.u32 %v106, 16
    %v215 = vrot.slane %v213, 7
    %v216 = vrot.slane %v215, 1
    %v218 = vshll.u32 %v107, 16
    %v220 = vsel %vm171, %v216, %v218
    %v221 = vshrl.u32 %v107, 16
    %v223 = vrot.slane %v221, 7
    %v224 = vrot.slane %v223, 1
    %v226 = vshll.u32 %v108, 16
    %v228 = vsel %vm171, %v224, %v226
    %v230 = vshrl.u32 %v123, 16
    %v232 = vrot.slane %v230, 7
    %v233 = vrot.slane %v232, 1
    %v235 = vshll.u32 %v130, 16
    %v237 = vsel %vm171, %v233, %v235
    %v238 = vshrl.u32 %v130, 16
    %v240 = vrot.slane %v238, 7
    %v241 = vrot.slane %v240, 1
    %v243 = vshll.u32 %v131, 16
    %v245 = vsel %vm171, %v241, %v243
    %v246 = vshrl.u32 %v131, 16
    %v248 = vrot.slane %v246, 7
    %v249 = vrot.slane %v248, 1
    %v251 = vshll.u32 %v132, 16
    %v253 = vsel %vm171, %v249, %v251
    %v254 = vshrl.u32 %v132, 16
    %v256 = vrot.slane %v254, 7
    %v257 = vrot.slane %v256, 1
    %v259 = vshll.u32 %v147, 16
    %v261 = vsel %vm171, %v257, %v259
    %v262 = vshrl.u32 %v147, 16
    %v264 = vrot.slane %v262, 7
    %v265 = vrot.slane %v264, 1
    %v267 = vshll.u32 %v154, 16
    %v269 = vsel %vm171, %v265, %v267
    %v270 = vshrl.u32 %v154, 16
    %v272 = vrot.slane %v270, 7
    %v273 = vrot.slane %v272, 1
    %v275 = vshll.u32 %v155, 16
    %v277 = vsel %vm171, %v273, %v275
    %v278 = vshrl.u32 %v155, 16
    %v280 = vrot.slane %v278, 7
    %v281 = vrot.slane %v280, 1
    %v283 = vshll.u32 %v156, 16
    %v285 = vsel %vm171, %v281, %v283
    %v286 = vcombine.low %v180, %v188
    %v287 = vcombine.low %v196, %v204
    %v288 = vcombine.low %v212, %v220
    %v289 = vcombine.low %v228, %v237
    %v291 = vunpack.c.l.s4 1966171168
    %v292 = vunpack.c.0.s8 %v291
    %v293 = vlaneseq
    %v294 = vshrl.u32 %v293, 7
    %v295 = vsub.s32 %v292, %v294
    %v296 = vrot.slane %v286, %v295
    %v298 = vunpack.c.l.s4 1966171168
    %v299 = vunpack.c.0.s8 %v298
    %v300 = vlaneseq
    %v301 = vshrl.u32 %v300, 7
    %v302 = vsub.s32 %v299, %v301
    %v303 = vrot.slane %v287, %v302
    %v305 = vunpack.c.l.s4 1966171168
    %v306 = vunpack.c.0.s8 %v305
    %v307 = vlaneseq
    %v308 = vshrl.u32 %v307, 7
    %v309 = vsub.s32 %v306, %v308
    %v310 = vrot.slane %v288, %v309
    %v312 = vunpack.c.l.s4 1966171168
    %v313 = vunpack.c.0.s8 %v312
    %v314 = vlaneseq
    %v315 = vshrl.u32 %v314, 7
    %v316 = vsub.s32 %v313, %v315
    %v317 = vrot.slane %v289, %v316
    %v318 = vcombine.low %v296, %v303
    %v319 = vcombine.low %v310, %v317
    %v321 = vunpack.c.l.s4 1966171168
    %v322 = vunpack.c.0.s8 %v321
    %v323 = vlaneseq
    %v324 = vshrl.u32 %v323, 7
    %v325 = vsub.s32 %v322, %v324
    %v326 = vrot.slane %v318, %v325
    %v328 = vunpack.c.l.s4 1966171168
    %v329 = vunpack.c.0.s8 %v328
    %v330 = vlaneseq
    %v331 = vshrl.u32 %v330, 7
    %v332 = vsub.s32 %v329, %v331
    %v333 = vrot.slane %v319, %v332
    %v334 = vcombine.low %v326, %v333
    %v335 = vcombine.low %v245, %v253
    %v336 = vcombine.low %v261, %v269
    %v337 = vcombine.low %v277, %v285
    %v339 = vunpack.c.l.s4 1966171168
    %v340 = vunpack.c.0.s8 %v339
    %v341 = vlaneseq
    %v342 = vshrl.u32 %v341, 7
    %v343 = vsub.s32 %v340, %v342
    %v344 = vrot.slane %v335, %v343
    %v346 = vunpack.c.l.s4 1966171168
    %v347 = vunpack.c.0.s8 %v346
    %v348 = vlaneseq
    %v349 = vshrl.u32 %v348, 7
    %v350 = vsub.s32 %v347, %v349
    %v351 = vrot.slane %v336, %v350
    %v353 = vunpack.c.l.s4 1966171168
    %v354 = vunpack.c.0.s8 %v353
    %v355 = vlaneseq
    %v356 = vshrl.u32 %v355, 7
    %v357 = vsub.s32 %v354, %v356
    %v358 = vrot.slane %v337, %v357
    %v359 = vcombine.low %v344, %v351
    %v361 = vunpack.c.l.s4 1966171168
    %v362 = vunpack.c.0.s8 %v361
    %v363 = vlaneseq
    %v364 = vshrl.u32 %v363, 7
    %v365 = vsub.s32 %v362, %v364
    %v366 = vrot.slane %v359, %v365
    %v368 = vunpack.c.l.s4 1966171168
    %v369 = vunpack.c.0.s8 %v368
    %v370 = vlaneseq
    %v371 = vshrl.u32 %v370, 7
    %v372 = vsub.s32 %v369, %v371
    %v373 = vrot.slane %v358, %v372
    %v374 = vcombine.low %v366, %v373
    %v379 = vunpack.c.l.b16 %v53
    %v380 = vunpack.c.l.b16 %v54
    %v381 = vunpack.c.l.b16 %v55
    %v382 = vunpack.c.l.b16 %v56
    %v383 = vpack.c.b16 %v380, %v379
    %v384 = vpack.c.b16 %v382, %v381
    %vm387 = vcmask 261120
    %v389 = vsel %vm387, %v334, 0
    %v392 = vsel %vm387, %v374, 0
    %394 = vmatprep.subr.bf16.mxu0 0
    %395 = vmatpush1.bf16.msra.mxu0 0
    %396 = vmatprep.subr.bf16.mxu0 0
    %397 = vmatpush1.bf16.msra.mxu0 0
    %398 = vmatprep.subr.bf16.mxu0 0
    %399 = vmatpush1.bf16.msra.mxu0 0
    %400 = vmatprep.subr.bf16.mxu0 0
    %401 = vmatpush1.bf16.msra.mxu0 0
    %402 = vmatprep.subr.bf16.mxu0 0
    %403 = vmatpush1.bf16.msra.mxu0 0
    %404 = vmatprep.subr.bf16.mxu0 0
    %405 = vmatpush1.bf16.msra.mxu0 0
    %406 = vmatprep.subr.bf16.mxu0 0
    %407 = vmatpush1.bf16.msra.mxu0 %v384
    %408 = vmatprep.subr.bf16.mxu0 0
    %409 = vmatpush1.bf16.msra.mxu0 %v383
    %410 = vmatprep.subr.bf16.mxu0 0
    %411 = vmatpush2.bf16.msra.mxu0 0
    %412 = vmatprep.subr.bf16.mxu0 0
    %413 = vmatpush2.bf16.msra.mxu0 0
    %414 = vmatprep.subr.bf16.mxu0 0
    %415 = vmatpush2.bf16.msra.mxu0 0
    %416 = vmatprep.subr.bf16.mxu0 0
    %417 = vmatpush2.bf16.msra.mxu0 0
    %418 = vmatprep.subr.bf16.mxu0 0
    %419 = vmatpush2.bf16.msra.mxu0 0
    %420 = vmatprep.subr.bf16.mxu0 0
    %421 = vmatpush2.bf16.msra.mxu0 0
    %422 = vmatprep.subr.bf16.mxu0 0
    %423 = vmatpush2.bf16.msra.mxu0 0
    %424 = vmatprep.subr.bf16.mxu0 0
    %425 = vmatpush2.bf16.msra.mxu0 0
    %426 = vmatprep.mubr.bf16.mxu0 0
    %427 = vmatmul.mubr.bf16.gmra.mxu0 %v389
    %v428 = vpop.f32.mrf.mxu0
    %v429 = vadd.f32 0.0, %v428
    %v430 = vpop.f32.mrf.mxu0
    %v431 = vpop.f32.mrf.mxu0
    %v432 = vadd.f32 0.0, %v431
    %v433 = vpop.f32.mrf.mxu0
    %434 = vmatprep.mubr.bf16.mxu0 0
    %435 = vmatmul.mubr.bf16.gmra.mxu0 %v392
    %v436 = vpop.f32.mrf.mxu0
    %v437 = vadd.f32 0.0, %v436
    %v438 = vpop.f32.mrf.mxu0
    %v439 = vpop.f32.mrf.mxu0
    %v440 = vadd.f32 0.0, %v439
    %v441 = vpop.f32.mrf.mxu0
    %442 = vdwg.mxu0
    %v443 = vcombine.low %v75, %v82
    %v444 = vcombine.low %v83, %v84
    %v445 = vcombine.low %v99, %v106
    %v446 = vcombine.low %v107, %v123
    %v448 = vunpack.c.l.s4 1966171168
    %v449 = vunpack.c.0.s8 %v448
    %v450 = vlaneseq
    %v451 = vshrl.u32 %v450, 7
    %v452 = vsub.s32 %v449, %v451
    %v453 = vrot.slane %v443, %v452
    %v455 = vunpack.c.l.s4 1966171168
    %v456 = vunpack.c.0.s8 %v455
    %v457 = vlaneseq
    %v458 = vshrl.u32 %v457, 7
    %v459 = vsub.s32 %v456, %v458
    %v460 = vrot.slane %v444, %v459
    %v462 = vunpack.c.l.s4 1966171168
    %v463 = vunpack.c.0.s8 %v462
    %v464 = vlaneseq
    %v465 = vshrl.u32 %v464, 7
    %v466 = vsub.s32 %v463, %v465
    %v467 = vrot.slane %v445, %v466
    %v469 = vunpack.c.l.s4 1966171168
    %v470 = vunpack.c.0.s8 %v469
    %v471 = vlaneseq
    %v472 = vshrl.u32 %v471, 7
    %v473 = vsub.s32 %v470, %v472
    %v474 = vrot.slane %v446, %v473
    %v475 = vcombine.low %v453, %v460
    %v476 = vcombine.low %v467, %v474
    %v478 = vunpack.c.l.s4 1966171168
    %v479 = vunpack.c.0.s8 %v478
    %v480 = vlaneseq
    %v481 = vshrl.u32 %v480, 7
    %v482 = vsub.s32 %v479, %v481
    %v483 = vrot.slane %v475, %v482
    %v485 = vunpack.c.l.s4 1966171168
    %v486 = vunpack.c.0.s8 %v485
    %v487 = vlaneseq
    %v488 = vshrl.u32 %v487, 7
    %v489 = vsub.s32 %v486, %v488
    %v490 = vrot.slane %v476, %v489
    %v491 = vcombine.low %v483, %v490
    %v492 = vcombine.low %v130, %v131
    %v493 = vcombine.low %v132, %v147
    %v494 = vcombine.low %v154, %v155
    %v496 = vunpack.c.l.s4 1966171168
    %v497 = vunpack.c.0.s8 %v496
    %v498 = vlaneseq
    %v499 = vshrl.u32 %v498, 7
    %v500 = vsub.s32 %v497, %v499
    %v501 = vrot.slane %v492, %v500
    %v503 = vunpack.c.l.s4 1966171168
    %v504 = vunpack.c.0.s8 %v503
    %v505 = vlaneseq
    %v506 = vshrl.u32 %v505, 7
    %v507 = vsub.s32 %v504, %v506
    %v508 = vrot.slane %v493, %v507
    %v510 = vunpack.c.l.s4 1966171168
    %v511 = vunpack.c.0.s8 %v510
    %v512 = vlaneseq
    %v513 = vshrl.u32 %v512, 7
    %v514 = vsub.s32 %v511, %v513
    %v515 = vrot.slane %v494, %v514
    %v516 = vcombine.low %v501, %v508
    %v518 = vunpack.c.l.s4 1966171168
    %v519 = vunpack.c.0.s8 %v518
    %v520 = vlaneseq
    %v521 = vshrl.u32 %v520, 7
    %v522 = vsub.s32 %v519, %v521
    %v523 = vrot.slane %v516, %v522
    %v525 = vunpack.c.l.s4 1966171168
    %v526 = vunpack.c.0.s8 %v525
    %v527 = vlaneseq
    %v528 = vshrl.u32 %v527, 7
    %v529 = vsub.s32 %v526, %v528
    %v530 = vrot.slane %v515, %v529
    %v531 = vcombine.low %v523, %v530
    %v536 = vunpack.c.l.b16 %v48
    %v537 = vunpack.c.l.b16 %v49
    %v538 = vunpack.c.l.b16 %v50
    %v539 = vunpack.c.l.b16 %v51
    %v540 = vpack.c.b16 %v537, %v536
    %v541 = vpack.c.b16 %v539, %v538
    %v545 = vsel %vm387, %v491, 0
    %v548 = vsel %vm387, %v531, 0
    %550 = vmatprep.subr.bf16.mxu0 0
    %551 = vmatpush1.bf16.msra.mxu0 0
    %552 = vmatprep.subr.bf16.mxu0 0
    %553 = vmatpush1.bf16.msra.mxu0 0
    %554 = vmatprep.subr.bf16.mxu0 0
    %555 = vmatpush1.bf16.msra.mxu0 0
    %556 = vmatprep.subr.bf16.mxu0 0
    %557 = vmatpush1.bf16.msra.mxu0 0
    %558 = vmatprep.subr.bf16.mxu0 0
    %559 = vmatpush1.bf16.msra.mxu0 0
    %560 = vmatprep.subr.bf16.mxu0 0
    %561 = vmatpush1.bf16.msra.mxu0 0
    %562 = vmatprep.subr.bf16.mxu0 0
    %563 = vmatpush1.bf16.msra.mxu0 %v541
    %564 = vmatprep.subr.bf16.mxu0 0
    %565 = vmatpush1.bf16.msra.mxu0 %v540
    %566 = vmatprep.subr.bf16.mxu0 0
    %567 = vmatpush2.bf16.msra.mxu0 0
    %568 = vmatprep.subr.bf16.mxu0 0
    %569 = vmatpush2.bf16.msra.mxu0 0
    %570 = vmatprep.subr.bf16.mxu0 0
    %571 = vmatpush2.bf16.msra.mxu0 0
    %572 = vmatprep.subr.bf16.mxu0 0
    %573 = vmatpush2.bf16.msra.mxu0 0
    %574 = vmatprep.subr.bf16.mxu0 0
    %575 = vmatpush2.bf16.msra.mxu0 0
    %576 = vmatprep.subr.bf16.mxu0 0
    %577 = vmatpush2.bf16.msra.mxu0 0
    %578 = vmatprep.subr.bf16.mxu0 0
    %579 = vmatpush2.bf16.msra.mxu0 0
    %580 = vmatprep.subr.bf16.mxu0 0
    %581 = vmatpush2.bf16.msra.mxu0 0
    %582 = vmatprep.mubr.bf16.mxu0 0
    %583 = vmatmul.mubr.bf16.gmra.mxu0 %v545
    %v584 = vpop.f32.mrf.mxu0
    %v585 = vadd.f32 %v429, %v584
    %v586 = vpop.f32.mrf.mxu0
    %v587 = vpop.f32.mrf.mxu0
    %v588 = vadd.f32 %v432, %v587
    %v589 = vpop.f32.mrf.mxu0
    %590 = vmatprep.mubr.bf16.mxu0 0
    %591 = vmatmul.mubr.bf16.gmra.mxu0 %v548
    %v592 = vpop.f32.mrf.mxu0
    %v593 = vadd.f32 %v437, %v592
    %v594 = vpop.f32.mrf.mxu0
    %v595 = vpop.f32.mrf.mxu0
    %v596 = vadd.f32 %v440, %v595
    %v597 = vpop.f32.mrf.mxu0
    %598 = vdwg.mxu0
    %v603 = vcombine.high %v585, %v585
    %v605 = vunpack.c.l.s4 1983009808
    %v606 = vunpack.c.0.s8 %v605
    %v607 = vlaneseq
    %v608 = vshrl.u32 %v607, 7
    %v609 = vsub.s32 %v606, %v608
    %v610 = vrot.slane %v585, %v609
    %v612 = vunpack.c.l.s4 1983009808
    %v613 = vunpack.c.0.s8 %v612
    %v614 = vlaneseq
    %v615 = vshrl.u32 %v614, 7
    %v616 = vsub.s32 %v613, %v615
    %v617 = vrot.slane %v603, %v616
    %v618 = vcombine.high %v610, %v610
    %v619 = vcombine.high %v617, %v617
    %v620 = vcombine.high %v588, %v588
    %v622 = vunpack.c.l.s4 1983009808
    %v623 = vunpack.c.0.s8 %v622
    %v624 = vlaneseq
    %v625 = vshrl.u32 %v624, 7
    %v626 = vsub.s32 %v623, %v625
    %v627 = vrot.slane %v588, %v626
    %v629 = vunpack.c.l.s4 1983009808
    %v630 = vunpack.c.0.s8 %v629
    %v631 = vlaneseq
    %v632 = vshrl.u32 %v631, 7
    %v633 = vsub.s32 %v630, %v632
    %v634 = vrot.slane %v620, %v633
    %v635 = vcombine.high %v627, %v627
    %v636 = vcombine.high %v634, %v634
    %v637 = vcombine.high %v593, %v593
    %v639 = vunpack.c.l.s4 1983009808
    %v640 = vunpack.c.0.s8 %v639
    %v641 = vlaneseq
    %v642 = vshrl.u32 %v641, 7
    %v643 = vsub.s32 %v640, %v642
    %v644 = vrot.slane %v593, %v643
    %v646 = vunpack.c.l.s4 1983009808
    %v647 = vunpack.c.0.s8 %v646
    %v648 = vlaneseq
    %v649 = vshrl.u32 %v648, 7
    %v650 = vsub.s32 %v647, %v649
    %v651 = vrot.slane %v637, %v650
    %v652 = vcombine.high %v644, %v644
    %v653 = vcombine.high %v651, %v651
    %v655 = vunpack.c.l.s4 1983009808
    %v656 = vunpack.c.0.s8 %v655
    %v657 = vlaneseq
    %v658 = vshrl.u32 %v657, 7
    %v659 = vsub.s32 %v656, %v658
    %v660 = vrot.slane %v596, %v659
    %v661 = vcombine.high %v660, %v660
    %s676 = scalar_lea.vmem [#allocation5], 32
    %v677 = vld [vmem:[%s676] sm:$0xf]
    %v678 = vld [vmem:[%s676 + $0x4] sm:$0xf]
    %v679 = vld [vmem:[%s676 + $0x8] sm:$0xf]
    %v680 = vld [vmem:[%s676 + $0xc] sm:$0xf]
    %v681 = vcombine.low %v82, %v83
    %v682 = vcombine.low %v84, %v99
    %v683 = vcombine.low %v106, %v107
    %v684 = vcombine.low %v108, %v130
    %v686 = vunpack.c.l.s4 1966171168
    %v687 = vunpack.c.0.s8 %v686
    %v688 = vlaneseq
    %v689 = vshrl.u32 %v688, 7
    %v690 = vsub.s32 %v687, %v689
    %v691 = vrot.slane %v681, %v690
    %v693 = vunpack.c.l.s4 1966171168
    %v694 = vunpack.c.0.s8 %v693
    %v695 = vlaneseq
    %v696 = vshrl.u32 %v695, 7
    %v697 = vsub.s32 %v694, %v696
    %v698 = vrot.slane %v682, %v697
    %v700 = vunpack.c.l.s4 1966171168
    %v701 = vunpack.c.0.s8 %v700
    %v702 = vlaneseq
    %v703 = vshrl.u32 %v702, 7
    %v704 = vsub.s32 %v701, %v703
    %v705 = vrot.slane %v683, %v704
    %v707 = vunpack.c.l.s4 1966171168
    %v708 = vunpack.c.0.s8 %v707
    %v709 = vlaneseq
    %v710 = vshrl.u32 %v709, 7
    %v711 = vsub.s32 %v708, %v710
    %v712 = vrot.slane %v684, %v711
    %v713 = vcombine.low %v691, %v698
    %v714 = vcombine.low %v705, %v712
    %v716 = vunpack.c.l.s4 1966171168
    %v717 = vunpack.c.0.s8 %v716
    %v718 = vlaneseq
    %v719 = vshrl.u32 %v718, 7
    %v720 = vsub.s32 %v717, %v719
    %v721 = vrot.slane %v713, %v720
    %v723 = vunpack.c.l.s4 1966171168
    %v724 = vunpack.c.0.s8 %v723
    %v725 = vlaneseq
    %v726 = vshrl.u32 %v725, 7
    %v727 = vsub.s32 %v724, %v726
    %v728 = vrot.slane %v714, %v727
    %v729 = vcombine.low %v721, %v728
    %v730 = vcombine.low %v131, %v132
    %v731 = vcombine.low %v147, %v154
    %v732 = vcombine.low %v155, %v156
    %v734 = vunpack.c.l.s4 1966171168
    %v735 = vunpack.c.0.s8 %v734
    %v736 = vlaneseq
    %v737 = vshrl.u32 %v736, 7
    %v738 = vsub.s32 %v735, %v737
    %v739 = vrot.slane %v730, %v738
    %v741 = vunpack.c.l.s4 1966171168
    %v742 = vunpack.c.0.s8 %v741
    %v743 = vlaneseq
    %v744 = vshrl.u32 %v743, 7
    %v745 = vsub.s32 %v742, %v744
    %v746 = vrot.slane %v731, %v745
    %v748 = vunpack.c.l.s4 1966171168
    %v749 = vunpack.c.0.s8 %v748
    %v750 = vlaneseq
    %v751 = vshrl.u32 %v750, 7
    %v752 = vsub.s32 %v749, %v751
    %v753 = vrot.slane %v732, %v752
    %v754 = vcombine.low %v739, %v746
    %v756 = vunpack.c.l.s4 1966171168
    %v757 = vunpack.c.0.s8 %v756
    %v758 = vlaneseq
    %v759 = vshrl.u32 %v758, 7
    %v760 = vsub.s32 %v757, %v759
    %v761 = vrot.slane %v754, %v760
    %v763 = vunpack.c.l.s4 1966171168
    %v764 = vunpack.c.0.s8 %v763
    %v765 = vlaneseq
    %v766 = vshrl.u32 %v765, 7
    %v767 = vsub.s32 %v764, %v766
    %v768 = vrot.slane %v753, %v767
    %v769 = vcombine.low %v761, %v768
    %v774 = vunpack.c.l.b16 %v677
    %v775 = vunpack.c.l.b16 %v678
    %v776 = vunpack.c.l.b16 %v679
    %v777 = vunpack.c.l.b16 %v680
    %v778 = vpack.c.b16 %v775, %v774
    %v779 = vpack.c.b16 %v777, %v776
    %v783 = vsel %vm387, %v729, 0
    %v786 = vsel %vm387, %v769, 0
    %788 = vmatprep.subr.bf16.mxu0 0
    %789 = vmatpush1.bf16.msra.mxu0 0
    %790 = vmatprep.subr.bf16.mxu0 0
    %791 = vmatpush1.bf16.msra.mxu0 0
    %792 = vmatprep.subr.bf16.mxu0 0
    %793 = vmatpush1.bf16.msra.mxu0 0
    %794 = vmatprep.subr.bf16.mxu0 0
    %795 = vmatpush1.bf16.msra.mxu0 0
    %796 = vmatprep.subr.bf16.mxu0 0
    %797 = vmatpush1.bf16.msra.mxu0 0
    %798 = vmatprep.subr.bf16.mxu0 0
    %799 = vmatpush1.bf16.msra.mxu0 0
    %800 = vmatprep.subr.bf16.mxu0 0
    %801 = vmatpush1.bf16.msra.mxu0 %v779
    %802 = vmatprep.subr.bf16.mxu0 0
    %803 = vmatpush1.bf16.msra.mxu0 %v778
    %804 = vmatprep.subr.bf16.mxu0 0
    %805 = vmatpush2.bf16.msra.mxu0 0
    %806 = vmatprep.subr.bf16.mxu0 0
    %807 = vmatpush2.bf16.msra.mxu0 0
    %808 = vmatprep.subr.bf16.mxu0 0
    %809 = vmatpush2.bf16.msra.mxu0 0
    %810 = vmatprep.subr.bf16.mxu0 0
    %811 = vmatpush2.bf16.msra.mxu0 0
    %812 = vmatprep.subr.bf16.mxu0 0
    %813 = vmatpush2.bf16.msra.mxu0 0
    %814 = vmatprep.subr.bf16.mxu0 0
    %815 = vmatpush2.bf16.msra.mxu0 0
    %816 = vmatprep.subr.bf16.mxu0 0
    %817 = vmatpush2.bf16.msra.mxu0 0
    %818 = vmatprep.subr.bf16.mxu0 0
    %819 = vmatpush2.bf16.msra.mxu0 0
    %820 = vmatprep.mubr.bf16.mxu0 0
    %821 = vmatmul.mubr.bf16.gmra.mxu0 %v783
    %v822 = vpop.f32.mrf.mxu0
    %v823 = vadd.f32 0.0, %v822
    %v824 = vpop.f32.mrf.mxu0
    %v825 = vpop.f32.mrf.mxu0
    %v826 = vadd.f32 0.0, %v825
    %v827 = vpop.f32.mrf.mxu0
    %828 = vmatprep.mubr.bf16.mxu0 0
    %829 = vmatmul.mubr.bf16.gmra.mxu0 %v786
    %v830 = vpop.f32.mrf.mxu0
    %v831 = vadd.f32 0.0, %v830
    %v832 = vpop.f32.mrf.mxu0
    %v833 = vpop.f32.mrf.mxu0
    %v834 = vadd.f32 0.0, %v833
    %v835 = vpop.f32.mrf.mxu0
    %836 = vdwg.mxu0
    %v841 = vcombine.high %v823, %v823
    %v843 = vunpack.c.l.s4 1983009808
    %v844 = vunpack.c.0.s8 %v843
    %v845 = vlaneseq
    %v846 = vshrl.u32 %v845, 7
    %v847 = vsub.s32 %v844, %v846
    %v848 = vrot.slane %v823, %v847
    %v850 = vunpack.c.l.s4 1983009808
    %v851 = vunpack.c.0.s8 %v850
    %v852 = vlaneseq
    %v853 = vshrl.u32 %v852, 7
    %v854 = vsub.s32 %v851, %v853
    %v855 = vrot.slane %v841, %v854
    %v856 = vcombine.high %v848, %v848
    %v857 = vcombine.high %v855, %v855
    %v858 = vcombine.high %v826, %v826
    %v860 = vunpack.c.l.s4 1983009808
    %v861 = vunpack.c.0.s8 %v860
    %v862 = vlaneseq
    %v863 = vshrl.u32 %v862, 7
    %v864 = vsub.s32 %v861, %v863
    %v865 = vrot.slane %v826, %v864
    %v867 = vunpack.c.l.s4 1983009808
    %v868 = vunpack.c.0.s8 %v867
    %v869 = vlaneseq
    %v870 = vshrl.u32 %v869, 7
    %v871 = vsub.s32 %v868, %v870
    %v872 = vrot.slane %v858, %v871
    %v873 = vcombine.high %v865, %v865
    %v874 = vcombine.high %v872, %v872
    %v875 = vcombine.high %v831, %v831
    %v877 = vunpack.c.l.s4 1983009808
    %v878 = vunpack.c.0.s8 %v877
    %v879 = vlaneseq
    %v880 = vshrl.u32 %v879, 7
    %v881 = vsub.s32 %v878, %v880
    %v882 = vrot.slane %v831, %v881
    %v884 = vunpack.c.l.s4 1983009808
    %v885 = vunpack.c.0.s8 %v884
    %v886 = vlaneseq
    %v887 = vshrl.u32 %v886, 7
    %v888 = vsub.s32 %v885, %v887
    %v889 = vrot.slane %v875, %v888
    %v890 = vcombine.high %v882, %v882
    %v891 = vcombine.high %v889, %v889
    %v893 = vunpack.c.l.s4 1983009808
    %v894 = vunpack.c.0.s8 %v893
    %v895 = vlaneseq
    %v896 = vshrl.u32 %v895, 7
    %v897 = vsub.s32 %v894, %v896
    %v898 = vrot.slane %v834, %v897
    %v899 = vcombine.high %v898, %v898
    %v914 = vadd.f32 %v610, %v848
    %v915 = vadd.f32 %v618, %v856
    %v916 = vadd.f32 %v617, %v855
    %v917 = vadd.f32 %v619, %v857
    %v918 = vadd.f32 %v627, %v865
    %v919 = vadd.f32 %v635, %v873
    %v920 = vadd.f32 %v634, %v872
    %v921 = vadd.f32 %v636, %v874
    %v922 = vadd.f32 %v644, %v882
    %v923 = vadd.f32 %v652, %v890
    %v924 = vadd.f32 %v651, %v889
    %v925 = vadd.f32 %v653, %v891
    %v926 = vadd.f32 %v660, %v898
    %v927 = vadd.f32 %v661, %v899
    %v928 = vld [vmem:[%s2] sm:$0x1]
    %v930 = vlaneseq
    %v931 = vshrl.u32 %v930, 7
    %v932 = vsub.s32 0, %v931
    %v933 = vrot.slane %v928, %v932
    %v934 = vcombine.high %v933, %v933
    %v936 = vunpack.c.l.s4 1983009808
    %v937 = vunpack.c.0.s8 %v936
    %v938 = vlaneseq
    %v939 = vshrl.u32 %v938, 7
    %v940 = vsub.s32 %v937, %v939
    %v941 = vrot.slane %v933, %v940
    %v943 = vunpack.c.l.s4 1983009808
    %v944 = vunpack.c.0.s8 %v943
    %v945 = vlaneseq
    %v946 = vshrl.u32 %v945, 7
    %v947 = vsub.s32 %v944, %v946
    %v948 = vrot.slane %v934, %v947
    %v949 = vcombine.high %v941, %v941
    %v950 = vcombine.high %v948, %v948
    %v955 = vadd.f32 %v914, %v941
    %v956 = vadd.f32 %v915, %v949
    %v957 = vadd.f32 %v916, %v948
    %v958 = vadd.f32 %v917, %v950
    %v959 = vadd.f32 %v918, %v941
    %v960 = vadd.f32 %v919, %v949
    %v961 = vadd.f32 %v920, %v948
    %v962 = vadd.f32 %v921, %v941
    %v963 = vadd.f32 %v922, %v949
    %v964 = vadd.f32 %v923, %v948
    %v965 = vadd.f32 %v924, %v950
    %v966 = vadd.f32 %v925, %v941
    %v967 = vadd.f32 %v926, %v949
    %v968 = vadd.f32 %v927, %v948
    %v969 = vmax.f32 %v955, 0.0
    %v970 = vmax.f32 %v956, 0.0
    %v971 = vmax.f32 %v957, 0.0
    %v972 = vmax.f32 %v958, 0.0
    %v973 = vmax.f32 %v959, 0.0
    %v974 = vmax.f32 %v960, 0.0
    %v975 = vmax.f32 %v961, 0.0
    %v976 = vmax.f32 %v962, 0.0
    %v977 = vmax.f32 %v963, 0.0
    %v978 = vmax.f32 %v964, 0.0
    %v979 = vmax.f32 %v965, 0.0
    %v980 = vmax.f32 %v966, 0.0
    %v981 = vmax.f32 %v967, 0.0
    %v982 = vmax.f32 %v968, 0.0
    %v997 = vcombine.low %v969, %v970
    %v998 = vcombine.low %v971, %v972
    %v1000 = vunpack.c.l.s4 1983009808
    %v1001 = vunpack.c.0.s8 %v1000
    %v1002 = vlaneseq
    %v1003 = vshrl.u32 %v1002, 7
    %v1004 = vsub.s32 %v1001, %v1003
    %v1005 = vrot.slane %v997, %v1004
    %v1007 = vunpack.c.l.s4 1983009808
    %v1008 = vunpack.c.0.s8 %v1007
    %v1009 = vlaneseq
    %v1010 = vshrl.u32 %v1009, 7
    %v1011 = vsub.s32 %v1008, %v1010
    %v1012 = vrot.slane %v998, %v1011
    %v1013 = vcombine.low %v1005, %v1012
    %v1014 = vcombine.low %v973, %v974
    %v1016 = vunpack.c.l.s4 1983009808
    %v1017 = vunpack.c.0.s8 %v1016
    %v1018 = vlaneseq
    %v1019 = vshrl.u32 %v1018, 7
    %v1020 = vsub.s32 %v1017, %v1019
    %v1021 = vrot.slane %v1014, %v1020
    %v1023 = vunpack.c.l.s4 1983009808
    %v1024 = vunpack.c.0.s8 %v1023
    %v1025 = vlaneseq
    %v1026 = vshrl.u32 %v1025, 7
    %v1027 = vsub.s32 %v1024, %v1026
    %v1028 = vrot.slane %v975, %v1027
    %v1029 = vcombine.low %v1021, %v1028
    %v1030 = vcombine.low %v976, %v977
    %v1031 = vcombine.low %v978, %v979
    %v1033 = vunpack.c.l.s4 1983009808
    %v1034 = vunpack.c.0.s8 %v1033
    %v1035 = vlaneseq
    %v1036 = vshrl.u32 %v1035, 7
    %v1037 = vsub.s32 %v1034, %v1036
    %v1038 = vrot.slane %v1030, %v1037
    %v1040 = vunpack.c.l.s4 1983009808
    %v1041 = vunpack.c.0.s8 %v1040
    %v1042 = vlaneseq
    %v1043 = vshrl.u32 %v1042, 7
    %v1044 = vsub.s32 %v1041, %v1043
    %v1045 = vrot.slane %v1031, %v1044
    %v1046 = vcombine.low %v1038, %v1045
    %v1047 = vcombine.low %v980, %v981
    %v1049 = vunpack.c.l.s4 1983009808
    %v1050 = vunpack.c.0.s8 %v1049
    %v1051 = vlaneseq
    %v1052 = vshrl.u32 %v1051, 7
    %v1053 = vsub.s32 %v1050, %v1052
    %v1054 = vrot.slane %v1047, %v1053
    %v1056 = vunpack.c.l.s4 1983009808
    %v1057 = vunpack.c.0.s8 %v1056
    %v1058 = vlaneseq
    %v1059 = vshrl.u32 %v1058, 7
    %v1060 = vsub.s32 %v1057, %v1059
    %v1061 = vrot.slane %v982, %v1060
    %v1062 = vcombine.low %v1054, %v1061
    %vm1067 = vcmask 1045504
    %v1068 = vsel %vm1067, %v1029, 0.0
    %v1069 = vadd.f32 %v1013, %v1068
    %v1070 = vrot.slane %v1069, 4
    %v1071 = vadd.f32 %v1069, %v1070
    %v1072 = vrot.slane %v1071, 2
    %v1073 = vadd.f32 %v1071, %v1072
    %v1074 = vrot.slane %v1073, 1
    %v1075 = vadd.f32 %v1073, %v1074
    %v1076 = vsel %vm1067, %v1062, 0.0
    %v1077 = vadd.f32 %v1046, %v1076
    %v1078 = vrot.slane %v1077, 4
    %v1079 = vadd.f32 %v1077, %v1078
    %v1080 = vrot.slane %v1079, 2
    %v1081 = vadd.f32 %v1079, %v1080
    %v1082 = vrot.slane %v1081, 1
    %v1083 = vadd.f32 %v1081, %v1082
    %v1084 = vmul.f32 %v1075, 0.071428575
    %v1085 = vmul.f32 %v1083, 0.071428575
    %vm1088 = vcmask 1041409
    %v1089 = vsel %vm1088, %v1085, %v1084
    %1091 = vst [vmem:[#allocation7] sm:$0x3] %v1089
    // Predicated region
    $region22: #{tpu_custom_call.1} parent=1 // pred_check
      _
    $region23: #{tpu_custom_call.1} parent=1 // pred_check_branch
      %1093 = sbr.rel (0) target = $region25
    $region24: #{tpu_custom_call.1} parent=1 // pred_region
      %s1095 = ssub.s32 32, 32
      %1096 = vsyncadd [#allocation4], %s1095
      %s1098 = sshll.u32 [#allocation7], 4
      %s1099 = int_to_ptr.vmem [resolvable:$true] %s1098
      %1101 = dma.vmem_to_hbm [thread:$0]  %s1099, 32, %s3, [#allocation4]
    $region25: #{tpu_custom_call.1} parent=1 // pred_fallthru
      _
    // Predicated region
    $region26: #{tpu_custom_call.1} parent=1 // pred_check
      _
    $region27: #{tpu_custom_call.1} parent=1 // pred_check_branch
      %1103 = sbr.rel (0) target = $region29
    $region28: #{tpu_custom_call.1} parent=1 // pred_region
      %1104 = dma.done [#allocation4], 32
    $region29: #{tpu_custom_call.1} parent=1 // pred_fallthru
      _
    %1105 = vsyncpa [#allocation3], 1
    %1106 = vsyncpa [#allocation6], 1
    %1107 = vsyncpa [#allocation4], 1

</llo_original>
